<compile_context>
chip_gen: v7x
topology: tpu7x:2x2x1
jax: 0.10.0
libtpu: 0.0.40
codegen_flags: <defaults>
</compile_context>

<pallas_src>
import jax
import jax.numpy as jnp
from jax.experimental import pallas as pl
from jax.experimental.pallas import tpu as pltpu


VMEM_SPEC = pl.BlockSpec(memory_space=pltpu.MemorySpace.VMEM)


def _round_up(v, m):
    return (v + m - 1) // m * m


# ---------------------------------------------------------------------------
# Fused Pallas kernel: encoder Linear + all GCN layers + ReLU
# ---------------------------------------------------------------------------
def gnn_fused_kernel(a_hat_ref, d_inv_ref, x_ref, enc_w_ref, enc_b_ref,
                     gcn_w_ref, gcn_b_ref, o_ref):
    d_inv = d_inv_ref[...]                           # (N, 1) f32, precomputed in wrapper
    a_hat = a_hat_ref[...]                           # (N, N) bf16, exact 0/1 entries

    # --- input encoder: single Linear (Identity output activation) -----------
    h = (jnp.dot(x_ref[...], enc_w_ref[...], preferred_element_type=jnp.float32)
         + enc_b_ref[...])                           # (N, F) f32

    # --- GCN stack: conv -> ReLU -> dropout(p=0, identity) --------------------
    num_layers = gcn_w_ref.shape[0]
    for l in range(num_layers):                      # static unroll, small L
        # Feature transform at bf16 MXU rate, f32 accumulation.
        xw = jnp.dot(h.astype(jnp.bfloat16), gcn_w_ref[l],
                     preferred_element_type=jnp.float32)          # (N, F) f32
        # d_inv * (A_hat @ (d_inv * xw))  ==  D^-1/2 A_hat D^-1/2 (x @ W^T)
        agg = jnp.dot(a_hat, (xw * d_inv).astype(jnp.bfloat16),
                      preferred_element_type=jnp.float32)         # (N, F) f32
        h = jnp.maximum(d_inv * agg + gcn_b_ref[l], 0.0)          # f32 VPU path

    o_ref[...] = h


# ---------------------------------------------------------------------------
# Wrapper: padding to TPU-friendly shapes + pallas_call plumbing
# ---------------------------------------------------------------------------
def gnn_forward(x, edge_index, params, num_nodes):
    """Full GNN forward (one fused Pallas kernel).

    params: dict with 'enc_w' (enc,in), 'enc_b' (enc,), and lists
            'gcn_w' [(h_i, h_{i-1})], 'gcn_b' [(h_i,)].
    """
    in_features = x.shape[1]
    enc_features = params["enc_w"].shape[0]
    hidden = [w.shape[0] for w in params["gcn_w"]]
    out_features = hidden[-1]
    num_layers = len(params["gcn_w"])

    n_pad = _round_up(num_nodes, 8)                       # sublane-aligned nodes
    f_in_pad = _round_up(in_features, 128)                # lane-dense feature dims
    f_pad = _round_up(max(enc_features, *hidden), 128)

    # Dense adjacency A_hat[target, source] with self loops folded into the same
    # update chain (no jnp.eye temporary).  Padded nodes: self-loop only -> deg 1.
    diag = jnp.arange(n_pad, dtype=jnp.int32)
    a_hat = jnp.zeros((n_pad, n_pad), jnp.float32)
    a_hat = a_hat.at[edge_index[1], edge_index[0]].set(1.0)
    a_hat = a_hat.at[diag, diag].set(1.0)

    # Degrees / d_inv in f32 in the wrapper (exact regardless of A's kernel dtype).
    deg = jnp.sum(a_hat, axis=1, keepdims=True)           # (N, 1), >= 1
    d_inv = jax.lax.rsqrt(deg).astype(jnp.float32)

    a_hat_bf16 = a_hat.astype(jnp.bfloat16)                # 0/1 entries: lossless

    # Zero-padded, lane-dense operands (padding is mathematically inert).
    x_pad = jnp.zeros((n_pad, f_in_pad), jnp.float32)
    x_pad = x_pad.at[:num_nodes, :in_features].set(x)

    enc_w_t = jnp.zeros((f_in_pad, f_pad), jnp.float32)
    enc_w_t = enc_w_t.at[:in_features, :enc_features].set(params["enc_w"].T)
    enc_b = jnp.zeros((1, f_pad), jnp.float32)
    enc_b = enc_b.at[0, :enc_features].set(params["enc_b"])

    gcn_w = jnp.zeros((num_layers, f_pad, f_pad), jnp.float32)
    gcn_b = jnp.zeros((num_layers, 1, f_pad), jnp.float32)
    prev = enc_features
    for l, (w, b) in enumerate(zip(params["gcn_w"], params["gcn_b"])):
        gcn_w = gcn_w.at[l, :prev, :w.shape[0]].set(w.T)
        gcn_b = gcn_b.at[l, 0, :w.shape[0]].set(b)
        prev = w.shape[0]
    gcn_w_bf16 = gcn_w.astype(jnp.bfloat16)                # bf16 weights for MXU/DMA

    # Scoped-VMEM limit sized to the actual residency (+ intermediate headroom),
    # so graph sizes beyond the 16/32 MiB default still fit on-chip.
    resident_bytes = (
        n_pad * n_pad * 2                    # A_hat (bf16)
        + n_pad * 4                          # d_inv
        + n_pad * f_in_pad * 4               # x
        + f_in_pad * f_pad * 4 + f_pad * 4   # encoder weights/bias
        + num_layers * f_pad * f_pad * 2     # GCN weights (bf16)
        + num_layers * f_pad * 4             # GCN biases
        + n_pad * f_pad * 4                  # output
    )
    headroom_bytes = 6 * n_pad * f_pad * 4   # h / xw / agg / bf16 casts
    vmem_limit = min(100 * 1024 * 1024,
                     max(32 * 1024 * 1024,
                         int(1.25 * (resident_bytes + headroom_bytes))))

    out = pl.pallas_call(
        gnn_fused_kernel,
        out_shape=jax.ShapeDtypeStruct((n_pad, f_pad), jnp.float32),
        in_specs=[VMEM_SPEC] * 7,
        out_specs=VMEM_SPEC,
        compiler_params=pltpu.CompilerParams(vmem_limit_bytes=vmem_limit),
    )(a_hat_bf16, d_inv, x_pad, enc_w_t, enc_b, gcn_w_bf16, gcn_b)

    return out[:num_nodes, :out_features]


# ---------------------------------------------------------------------------
# Pure-JAX f32 reference (for correctness check)
# ---------------------------------------------------------------------------
def gnn_reference(x, edge_index, params, num_nodes):
    diag = jnp.arange(num_nodes, dtype=jnp.int32)
    a_hat = jnp.zeros((num_nodes, num_nodes), jnp.float32)
    a_hat = a_hat.at[edge_index[1], edge_index[0]].set(1.0)
    a_hat = a_hat.at[diag, diag].set(1.0)
    d = jnp.sum(a_hat, axis=1)
    d_inv_sqrt = 1.0 / jnp.sqrt(d)
    a_norm = d_inv_sqrt[:, None] * a_hat * d_inv_sqrt[None, :]

    h = x @ params["enc_w"].T + params["enc_b"][None, :]
    for w, b in zip(params["gcn_w"], params["gcn_b"]):
        h = jnp.maximum(a_norm @ (h @ w.T) + b[None, :], 0.0)
    return h


# ---------------------------------------------------------------------------
# Deterministic parameter init (synthetic; shapes follow the module's __init__)
# ---------------------------------------------------------------------------
def init_params(in_features, encoder_features, hidden_channels):
    key = jax.random.PRNGKey(42)
    keys = jax.random.split(key, 2 + 2 * len(hidden_channels))
    params = {
        "enc_w": 0.1 * jax.random.normal(keys[0], (encoder_features, in_features), jnp.float32),
        "enc_b": 0.1 * jax.random.normal(keys[1], (encoder_features,), jnp.float32),
        "gcn_w": [],
        "gcn_b": [],
    }
    prev = encoder_features
    for i, h in enumerate(hidden_channels):
        params["gcn_w"].append(
            0.1 * jax.random.normal(keys[2 + 2 * i], (h, prev), jnp.float32)
        )
        params["gcn_b"].append(
            0.1 * jax.random.normal(keys[3 + 2 * i], (h,), jnp.float32)
        )
        prev = h
    return params


if __name__ == "__main__":
    # Small shapes consistent with the module's forward.
    N = 8                 # number of graph nodes
    IN_FEATURES = 16
    ENCODER_FEATURES = 32
    HIDDEN_CHANNELS = [32, 32, 32, 32]   # num_conv_layers = 4

    key = jax.random.PRNGKey(0)
    x = jax.random.normal(key, (N, IN_FEATURES), jnp.float32)

    # Deterministic ring graph, both directions: edge_index shape (2, 2N).
    src = jnp.arange(N, dtype=jnp.int32)
    dst = (src + 1) % N
    edge_index = jnp.stack(
        [jnp.concatenate([src, dst]), jnp.concatenate([dst, src])], axis=0
    )

    params = init_params(IN_FEATURES, ENCODER_FEATURES, HIDDEN_CHANNELS)

    out = gnn_forward(x, edge_index, params, N)
    out = jax.block_until_ready(out)

    ref = gnn_reference(x, edge_index, params, N)
    assert out.shape == (N, HIDDEN_CHANNELS[-1])
    # bf16 matmul operands (f32 accumulation) vs. pure-f32 reference: relaxed tol.
    assert jnp.allclose(out, ref, atol=2e-2, rtol=2e-2), "mismatch vs reference"

    print("KERNEL_OK")
</pallas_src>

<mosaic_0001>
module attributes {stable_mosaic.version = 11 : i64} {
  func.func @gnn_fused_kernel(%arg0: memref<8x8xbf16, #tpu.memory_space<vmem>>, %arg1: memref<8x1xf32, #tpu.memory_space<vmem>>, %arg2: memref<8x128xf32, #tpu.memory_space<vmem>>, %arg3: memref<128x128xf32, #tpu.memory_space<vmem>>, %arg4: memref<1x128xf32, #tpu.memory_space<vmem>>, %arg5: memref<4x128x128xbf16, #tpu.memory_space<vmem>>, %arg6: memref<4x1x128xf32, #tpu.memory_space<vmem>>, %arg7: memref<8x128xf32, #tpu.memory_space<vmem>>) attributes {dimension_semantics = [], scalar_prefetch = 0 : i64, scratch_operands = 0 : i64, tpu.core_type = #tpu.core_type<tc>} {
    %c0 = arith.constant 0 : index
    %c0_0 = arith.constant 0 : index
    %0 = vector.load %arg1[%c0, %c0_0] : memref<8x1xf32, #tpu.memory_space<vmem>>, vector<8x1xf32>
    %c0_1 = arith.constant 0 : index
    %c0_2 = arith.constant 0 : index
    %1 = vector.load %arg0[%c0_1, %c0_2] : memref<8x8xbf16, #tpu.memory_space<vmem>>, vector<8x8xbf16>
    %c0_3 = arith.constant 0 : index
    %c0_4 = arith.constant 0 : index
    %2 = vector.load %arg2[%c0_3, %c0_4] : memref<8x128xf32, #tpu.memory_space<vmem>>, vector<8x128xf32>
    %c0_5 = arith.constant 0 : index
    %c0_6 = arith.constant 0 : index
    %3 = vector.load %arg3[%c0_5, %c0_6] : memref<128x128xf32, #tpu.memory_space<vmem>>, vector<128x128xf32>
    %cst = arith.constant dense<0.000000e+00> : vector<8x128xf32>
    %4 = tpu.matmul %2, %3, %cst {dimension_numbers = #tpu.dot_dimension_numbers<[1], [0], [0], [1], [0, 0, 1, 1], [], []>} : vector<8x128xf32>, vector<128x128xf32>, vector<8x128xf32> -> vector<8x128xf32>
    %c0_7 = arith.constant 0 : index
    %c0_8 = arith.constant 0 : index
    %5 = vector.load %arg4[%c0_7, %c0_8] : memref<1x128xf32, #tpu.memory_space<vmem>>, vector<1x128xf32>
    %6 = vector.broadcast %5 : vector<1x128xf32> to vector<8x128xf32>
    %7 = arith.addf %4, %6 : vector<8x128xf32>
    %8 = arith.truncf %7 : vector<8x128xf32> to vector<8x128xbf16>
    %c0_9 = arith.constant 0 : index
    %c0_10 = arith.constant 0 : index
    %c0_11 = arith.constant 0 : index
    %9 = vector.load %arg5[%c0_9, %c0_10, %c0_11] : memref<4x128x128xbf16, #tpu.memory_space<vmem>>, vector<1x128x128xbf16>
    %10 = vector.shape_cast %9 : vector<1x128x128xbf16> to vector<128x128xbf16>
    %cst_12 = arith.constant dense<0.000000e+00> : vector<8x128xf32>
    %11 = tpu.matmul %8, %10, %cst_12 {dimension_numbers = #tpu.dot_dimension_numbers<[1], [0], [0], [1], [0, 0, 1, 1], [], []>} : vector<8x128xbf16>, vector<128x128xbf16>, vector<8x128xf32> -> vector<8x128xf32>
    %12 = vector.broadcast %0 : vector<8x1xf32> to vector<8x128xf32>
    %13 = arith.mulf %11, %12 : vector<8x128xf32>
    %14 = arith.truncf %13 : vector<8x128xf32> to vector<8x128xbf16>
    %cst_13 = arith.constant dense<0.000000e+00> : vector<8x128xf32>
    %15 = tpu.matmul %1, %14, %cst_13 {dimension_numbers = #tpu.dot_dimension_numbers<[1], [0], [0], [1], [0, 0, 1, 1], [], []>} : vector<8x8xbf16>, vector<8x128xbf16>, vector<8x128xf32> -> vector<8x128xf32>
    %16 = vector.broadcast %0 : vector<8x1xf32> to vector<8x128xf32>
    %17 = arith.mulf %16, %15 : vector<8x128xf32>
    %c0_14 = arith.constant 0 : index
    %c0_15 = arith.constant 0 : index
    %c0_16 = arith.constant 0 : index
    %18 = vector.load %arg6[%c0_14, %c0_15, %c0_16] : memref<4x1x128xf32, #tpu.memory_space<vmem>>, vector<1x1x128xf32>
    %19 = vector.shape_cast %18 : vector<1x1x128xf32> to vector<1x128xf32>
    %20 = vector.broadcast %19 : vector<1x128xf32> to vector<8x128xf32>
    %21 = arith.addf %17, %20 : vector<8x128xf32>
    %cst_17 = arith.constant 0.000000e+00 : f32
    %22 = vector.broadcast %cst_17 : f32 to vector<8x128xf32>
    %23 = arith.maximumf %21, %22 : vector<8x128xf32>
    %24 = arith.truncf %23 : vector<8x128xf32> to vector<8x128xbf16>
    %c1 = arith.constant 1 : index
    %c0_18 = arith.constant 0 : index
    %c0_19 = arith.constant 0 : index
    %25 = vector.load %arg5[%c1, %c0_18, %c0_19] : memref<4x128x128xbf16, #tpu.memory_space<vmem>>, vector<1x128x128xbf16>
    %26 = vector.shape_cast %25 : vector<1x128x128xbf16> to vector<128x128xbf16>
    %cst_20 = arith.constant dense<0.000000e+00> : vector<8x128xf32>
    %27 = tpu.matmul %24, %26, %cst_20 {dimension_numbers = #tpu.dot_dimension_numbers<[1], [0], [0], [1], [0, 0, 1, 1], [], []>} : vector<8x128xbf16>, vector<128x128xbf16>, vector<8x128xf32> -> vector<8x128xf32>
    %28 = vector.broadcast %0 : vector<8x1xf32> to vector<8x128xf32>
    %29 = arith.mulf %27, %28 : vector<8x128xf32>
    %30 = arith.truncf %29 : vector<8x128xf32> to vector<8x128xbf16>
    %cst_21 = arith.constant dense<0.000000e+00> : vector<8x128xf32>
    %31 = tpu.matmul %1, %30, %cst_21 {dimension_numbers = #tpu.dot_dimension_numbers<[1], [0], [0], [1], [0, 0, 1, 1], [], []>} : vector<8x8xbf16>, vector<8x128xbf16>, vector<8x128xf32> -> vector<8x128xf32>
    %32 = vector.broadcast %0 : vector<8x1xf32> to vector<8x128xf32>
    %33 = arith.mulf %32, %31 : vector<8x128xf32>
    %c1_22 = arith.constant 1 : index
    %c0_23 = arith.constant 0 : index
    %c0_24 = arith.constant 0 : index
    %34 = vector.load %arg6[%c1_22, %c0_23, %c0_24] : memref<4x1x128xf32, #tpu.memory_space<vmem>>, vector<1x1x128xf32>
    %35 = vector.shape_cast %34 : vector<1x1x128xf32> to vector<1x128xf32>
    %36 = vector.broadcast %35 : vector<1x128xf32> to vector<8x128xf32>
    %37 = arith.addf %33, %36 : vector<8x128xf32>
    %cst_25 = arith.constant 0.000000e+00 : f32
    %38 = vector.broadcast %cst_25 : f32 to vector<8x128xf32>
    %39 = arith.maximumf %37, %38 : vector<8x128xf32>
    %40 = arith.truncf %39 : vector<8x128xf32> to vector<8x128xbf16>
    %c2 = arith.constant 2 : index
    %c0_26 = arith.constant 0 : index
    %c0_27 = arith.constant 0 : index
    %41 = vector.load %arg5[%c2, %c0_26, %c0_27] : memref<4x128x128xbf16, #tpu.memory_space<vmem>>, vector<1x128x128xbf16>
    %42 = vector.shape_cast %41 : vector<1x128x128xbf16> to vector<128x128xbf16>
    %cst_28 = arith.constant dense<0.000000e+00> : vector<8x128xf32>
    %43 = tpu.matmul %40, %42, %cst_28 {dimension_numbers = #tpu.dot_dimension_numbers<[1], [0], [0], [1], [0, 0, 1, 1], [], []>} : vector<8x128xbf16>, vector<128x128xbf16>, vector<8x128xf32> -> vector<8x128xf32>
    %44 = vector.broadcast %0 : vector<8x1xf32> to vector<8x128xf32>
    %45 = arith.mulf %43, %44 : vector<8x128xf32>
    %46 = arith.truncf %45 : vector<8x128xf32> to vector<8x128xbf16>
    %cst_29 = arith.constant dense<0.000000e+00> : vector<8x128xf32>
    %47 = tpu.matmul %1, %46, %cst_29 {dimension_numbers = #tpu.dot_dimension_numbers<[1], [0], [0], [1], [0, 0, 1, 1], [], []>} : vector<8x8xbf16>, vector<8x128xbf16>, vector<8x128xf32> -> vector<8x128xf32>
    %48 = vector.broadcast %0 : vector<8x1xf32> to vector<8x128xf32>
    %49 = arith.mulf %48, %47 : vector<8x128xf32>
    %c2_30 = arith.constant 2 : index
    %c0_31 = arith.constant 0 : index
    %c0_32 = arith.constant 0 : index
    %50 = vector.load %arg6[%c2_30, %c0_31, %c0_32] : memref<4x1x128xf32, #tpu.memory_space<vmem>>, vector<1x1x128xf32>
    %51 = vector.shape_cast %50 : vector<1x1x128xf32> to vector<1x128xf32>
    %52 = vector.broadcast %51 : vector<1x128xf32> to vector<8x128xf32>
    %53 = arith.addf %49, %52 : vector<8x128xf32>
    %cst_33 = arith.constant 0.000000e+00 : f32
    %54 = vector.broadcast %cst_33 : f32 to vector<8x128xf32>
    %55 = arith.maximumf %53, %54 : vector<8x128xf32>
    %56 = arith.truncf %55 : vector<8x128xf32> to vector<8x128xbf16>
    %c3 = arith.constant 3 : index
    %c0_34 = arith.constant 0 : index
    %c0_35 = arith.constant 0 : index
    %57 = vector.load %arg5[%c3, %c0_34, %c0_35] : memref<4x128x128xbf16, #tpu.memory_space<vmem>>, vector<1x128x128xbf16>
    %58 = vector.shape_cast %57 : vector<1x128x128xbf16> to vector<128x128xbf16>
    %cst_36 = arith.constant dense<0.000000e+00> : vector<8x128xf32>
    %59 = tpu.matmul %56, %58, %cst_36 {dimension_numbers = #tpu.dot_dimension_numbers<[1], [0], [0], [1], [0, 0, 1, 1], [], []>} : vector<8x128xbf16>, vector<128x128xbf16>, vector<8x128xf32> -> vector<8x128xf32>
    %60 = vector.broadcast %0 : vector<8x1xf32> to vector<8x128xf32>
    %61 = arith.mulf %59, %60 : vector<8x128xf32>
    %62 = arith.truncf %61 : vector<8x128xf32> to vector<8x128xbf16>
    %cst_37 = arith.constant dense<0.000000e+00> : vector<8x128xf32>
    %63 = tpu.matmul %1, %62, %cst_37 {dimension_numbers = #tpu.dot_dimension_numbers<[1], [0], [0], [1], [0, 0, 1, 1], [], []>} : vector<8x8xbf16>, vector<8x128xbf16>, vector<8x128xf32> -> vector<8x128xf32>
    %64 = vector.broadcast %0 : vector<8x1xf32> to vector<8x128xf32>
    %65 = arith.mulf %64, %63 : vector<8x128xf32>
    %c3_38 = arith.constant 3 : index
    %c0_39 = arith.constant 0 : index
    %c0_40 = arith.constant 0 : index
    %66 = vector.load %arg6[%c3_38, %c0_39, %c0_40] : memref<4x1x128xf32, #tpu.memory_space<vmem>>, vector<1x1x128xf32>
    %67 = vector.shape_cast %66 : vector<1x1x128xf32> to vector<1x128xf32>
    %68 = vector.broadcast %67 : vector<1x128xf32> to vector<8x128xf32>
    %69 = arith.addf %65, %68 : vector<8x128xf32>
    %cst_41 = arith.constant 0.000000e+00 : f32
    %70 = vector.broadcast %cst_41 : f32 to vector<8x128xf32>
    %71 = arith.maximumf %69, %70 : vector<8x128xf32>
    %c0_42 = arith.constant 0 : index
    %c0_43 = arith.constant 0 : index
    %72 = vector.load %arg7[%c0_42, %c0_43] : memref<8x128xf32, #tpu.memory_space<vmem>>, vector<8x128xf32>
    tpu.vector_store %arg7[%c0_42, %c0_43], %71 {strides = array<i32>} : memref<8x128xf32, #tpu.memory_space<vmem>>, vector<8x128xf32>,
    return
  }
}

</mosaic_0001>

<llo_original>
// kernel: tpu_custom_call.1
$region0: #{tpu_custom_call.1}
  #allocation0 [shape = 'u32[]', space=smem, size = 0x4, offset = 0x4, fixed_abs, tag = 'smem constant byte address 0x4 - core index']
  #allocation1 [shape = 'u32[144,128]{1,0:T(1,128)}', space=vmem, size = 0x12000, scoped, tag = 'internal scratch']
  %s0 = inlined_call_operand.vmem [shape: bf16[8,8], index: 0, kind: input, shape index: {}]
  %s1 = inlined_call_operand.vmem [shape: f32[8,1], index: 1, kind: input, shape index: {}]
  %s2 = inlined_call_operand.vmem [shape: f32[8,128], index: 2, kind: input, shape index: {}]
  %s3 = inlined_call_operand.hbm [shape: f32[128,128], index: 3, kind: input, shape index: {}]
  %s4 = inlined_call_operand.vmem [shape: f32[1,128], index: 4, kind: input, shape index: {}]
  %s5 = inlined_call_operand.hbm [shape: bf16[4,128,128], index: 5, kind: input, shape index: {}]
  %s6 = inlined_call_operand.vmem [shape: f32[4,1,128], index: 6, kind: input, shape index: {}]
  %s7 = inlined_call_operand.hbm [shape: f32[8,128], index: 7, kind: output, shape index: {}]
  %s8 = sld [smem:[#allocation0]]
  $region46: #{tpu_custom_call.1} parent=0
    _
  %s10 = ssub.s32 1, %s8
  %s11 = scalar_select 0, %s10, %s8
  $region1: #{tpu_custom_call.1} parent=0
    #allocation2 [shape = 'u8[65536]{0}', space=vmem, size = 0x10000, scoped, tag = 'input window, operand 3, single buffered']
    #allocation3 [shape = 's32[1]{0}', space=sflag, size = 0x4, scoped, tag = 'scoped memory for tpu_custom_call.1']
    #allocation4 [shape = 's32[1]{0}', space=sflag, size = 0x4, scoped, tag = 'scoped memory for tpu_custom_call.1']
    #allocation5 [shape = 'u8[131072]{0}', space=vmem, size = 0x20000, scoped, tag = 'input window, operand 5, single buffered']
    #allocation6 [shape = 's32[1]{0}', space=sflag, size = 0x4, scoped, tag = 'scoped memory for tpu_custom_call.1']
    #allocation7 [shape = 'u8[4096]{0}', space=vmem, size = 0x1000, scoped, tag = 'output window, operand 0, single buffered']
    %12 = vsyncpa [#allocation3], 0
    %13 = vsyncpa [#allocation6], 0
    %14 = vsyncpa [#allocation4], 0
    // Predicated region
    $region2: #{tpu_custom_call.1} parent=1 // pred_check
      _
    $region3: #{tpu_custom_call.1} parent=1 // pred_check_branch
      %16 = sbr.rel (0) target = $region5
    $region4: #{tpu_custom_call.1} parent=1 // pred_region
      _
    $region5: #{tpu_custom_call.1} parent=1 // pred_fallthru
      _
    // Predicated region
    $region6: #{tpu_custom_call.1} parent=1 // pred_check
      _
    $region7: #{tpu_custom_call.1} parent=1 // pred_check_branch
      %18 = sbr.rel (0) target = $region9
    $region8: #{tpu_custom_call.1} parent=1 // pred_region
      _
    $region9: #{tpu_custom_call.1} parent=1 // pred_fallthru
      _
    // Predicated region
    $region10: #{tpu_custom_call.1} parent=1 // pred_check
      _
    $region11: #{tpu_custom_call.1} parent=1 // pred_check_branch
      %20 = sbr.rel (0) target = $region13
    $region12: #{tpu_custom_call.1} parent=1 // pred_region
      _
    $region13: #{tpu_custom_call.1} parent=1 // pred_fallthru
      _
    // Predicated region
    $region14: #{tpu_custom_call.1} parent=1 // pred_check
      _
    $region15: #{tpu_custom_call.1} parent=1 // pred_check_branch
      %22 = sbr.rel (0) target = $region17
    $region16: #{tpu_custom_call.1} parent=1 // pred_region
      %s24 = ssub.s32 2048, 2048
      %25 = vsyncadd [#allocation3], %s24
      %s26 = sshll.u32 [#allocation2], 4
      %s27 = int_to_ptr.vmem [resolvable:$true] %s26
      %32 = dma.hbm_to_vmem [thread:$0]  %s3, 2048, %s27, [#allocation3], 128, 128, 8
    $region17: #{tpu_custom_call.1} parent=1 // pred_fallthru
      _
    // Predicated region
    $region18: #{tpu_custom_call.1} parent=1 // pred_check
      _
    $region19: #{tpu_custom_call.1} parent=1 // pred_check_branch
      %34 = sbr.rel (0) target = $region21
    $region20: #{tpu_custom_call.1} parent=1 // pred_region
      _
    $region21: #{tpu_custom_call.1} parent=1 // pred_fallthru
      _
    // Predicated region
    $region22: #{tpu_custom_call.1} parent=1 // pred_check
      _
    $region23: #{tpu_custom_call.1} parent=1 // pred_check_branch
      %36 = sbr.rel (0) target = $region25
    $region24: #{tpu_custom_call.1} parent=1 // pred_region
      %s38 = ssub.s32 4096, 4096
      %39 = vsyncadd [#allocation6], %s38
      %s40 = sshll.u32 [#allocation5], 4
      %s41 = int_to_ptr.vmem [resolvable:$true] %s40
      %46 = dma.hbm_to_vmem [thread:$0]  %s5, 4096, %s41, [#allocation6], 64, 64, 4
    $region25: #{tpu_custom_call.1} parent=1 // pred_fallthru
      _
    // Predicated region
    $region26: #{tpu_custom_call.1} parent=1 // pred_check
      _
    $region27: #{tpu_custom_call.1} parent=1 // pred_check_branch
      %48 = sbr.rel (0) target = $region29
    $region28: #{tpu_custom_call.1} parent=1 // pred_region
      _
    $region29: #{tpu_custom_call.1} parent=1 // pred_fallthru
      _
    // Predicated region
    $region30: #{tpu_custom_call.1} parent=1 // pred_check
      _
    $region31: #{tpu_custom_call.1} parent=1 // pred_check_branch
      %50 = sbr.rel (0) target = $region33
    $region32: #{tpu_custom_call.1} parent=1 // pred_region
      %51 = dma.done [#allocation3], 2048
    $region33: #{tpu_custom_call.1} parent=1 // pred_fallthru
      _
    // Predicated region
    $region34: #{tpu_custom_call.1} parent=1 // pred_check
      _
    $region35: #{tpu_custom_call.1} parent=1 // pred_check_branch
      %53 = sbr.rel (0) target = $region37
    $region36: #{tpu_custom_call.1} parent=1 // pred_region
      %54 = dma.done [#allocation6], 4096
    $region37: #{tpu_custom_call.1} parent=1 // pred_fallthru
      _
    %v56 = vld [vmem:[%s1] sm:$0xff]
    %v57 = vld [vmem:[%s0] sm:$0xf]
    %v58 = vld [vmem:[%s2] sm:$0xff]
    %v59 = vld [vmem:[#allocation2] sm:$0xff]
    %v60 = vld [vmem:[#allocation2 + $0x8] sm:$0xff]
    %v61 = vld [vmem:[#allocation2 + $0x10] sm:$0xff]
    %v62 = vld [vmem:[#allocation2 + $0x18] sm:$0xff]
    %v63 = vld [vmem:[#allocation2 + $0x20] sm:$0xff]
    %v64 = vld [vmem:[#allocation2 + $0x28] sm:$0xff]
    %v65 = vld [vmem:[#allocation2 + $0x30] sm:$0xff]
    %v66 = vld [vmem:[#allocation2 + $0x38] sm:$0xff]
    %v67 = vld [vmem:[#allocation2 + $0x40] sm:$0xff]
    %v68 = vld [vmem:[#allocation2 + $0x48] sm:$0xff]
    %v69 = vld [vmem:[#allocation2 + $0x50] sm:$0xff]
    %v70 = vld [vmem:[#allocation2 + $0x58] sm:$0xff]
    %v71 = vld [vmem:[#allocation2 + $0x60] sm:$0xff]
    %v72 = vld [vmem:[#allocation2 + $0x68] sm:$0xff]
    %v73 = vld [vmem:[#allocation2 + $0x70] sm:$0xff]
    %v74 = vld [vmem:[#allocation2 + $0x78] sm:$0xff]
    %v75 = vld [vmem:[%s4] sm:$0x1]
    %v77 = vlaneseq
    %v78 = vshrl.u32 %v77, 7
    %v79 = vsub.s32 0, %v78
    %v80 = vrot.slane %v75, %v79
    %82 = vmatprep.subr.mxu0 0.0
    %83 = vmatpush1.msra.mxu0 %v59
    %84 = vmatprep.subr.mxu0 0.0
    %85 = vmatpush1.msra.mxu0 %v60
    %86 = vmatprep.subr.mxu0 0.0
    %87 = vmatpush1.msra.mxu0 %v61
    %88 = vmatprep.subr.mxu0 0.0
    %89 = vmatpush1.msra.mxu0 %v62
    %90 = vmatprep.subr.mxu0 0.0
    %91 = vmatpush1.msra.mxu0 %v63
    %92 = vmatprep.subr.mxu0 0.0
    %93 = vmatpush1.msra.mxu0 %v64
    %94 = vmatprep.subr.mxu0 0.0
    %95 = vmatpush1.msra.mxu0 %v65
    %96 = vmatprep.subr.mxu0 0.0
    %97 = vmatpush1.msra.mxu0 %v66
    %98 = vmatprep.subr.mxu0 0.0
    %99 = vmatpush1.msra.mxu0 %v67
    %100 = vmatprep.subr.mxu0 0.0
    %101 = vmatpush1.msra.mxu0 %v68
    %102 = vmatprep.subr.mxu0 0.0
    %103 = vmatpush1.msra.mxu0 %v69
    %104 = vmatprep.subr.mxu0 0.0
    %105 = vmatpush1.msra.mxu0 %v70
    %106 = vmatprep.subr.mxu0 0.0
    %107 = vmatpush1.msra.mxu0 %v71
    %108 = vmatprep.subr.mxu0 0.0
    %109 = vmatpush1.msra.mxu0 %v72
    %110 = vmatprep.subr.mxu0 0.0
    %111 = vmatpush1.msra.mxu0 %v73
    %112 = vmatprep.subr.mxu0 0.0
    %113 = vmatpush1.msra.mxu0 %v74
    %114 = vmatprep.subr.mxu0 0.0
    %115 = vmatpush1.msra.mxu0 0.0
    %116 = vmatprep.subr.mxu0 0.0
    %117 = vmatpush1.msra.mxu0 0.0
    %118 = vmatprep.subr.mxu0 0.0
    %119 = vmatpush1.msra.mxu0 0.0
    %120 = vmatprep.subr.mxu0 0.0
    %121 = vmatpush1.msra.mxu0 0.0
    %122 = vmatprep.subr.mxu0 0.0
    %123 = vmatpush1.msra.mxu0 0.0
    %124 = vmatprep.subr.mxu0 0.0
    %125 = vmatpush1.msra.mxu0 0.0
    %126 = vmatprep.subr.mxu0 0.0
    %127 = vmatpush1.msra.mxu0 0.0
    %128 = vmatprep.subr.mxu0 0.0
    %129 = vmatpush1.msra.mxu0 0.0
    %130 = vmatprep.subr.mxu0 0.0
    %131 = vmatpush1.msra.mxu0 0.0
    %132 = vmatprep.subr.mxu0 0.0
    %133 = vmatpush1.msra.mxu0 0.0
    %134 = vmatprep.subr.mxu0 0.0
    %135 = vmatpush1.msra.mxu0 0.0
    %136 = vmatprep.subr.mxu0 0.0
    %137 = vmatpush1.msra.mxu0 0.0
    %138 = vmatprep.subr.mxu0 0.0
    %139 = vmatpush1.msra.mxu0 0.0
    %140 = vmatprep.subr.mxu0 0.0
    %141 = vmatpush1.msra.mxu0 0.0
    %142 = vmatprep.subr.mxu0 0.0
    %143 = vmatpush1.msra.mxu0 0.0
    %144 = vmatprep.subr.mxu0 0.0
    %145 = vmatpush1.msra.mxu0 0.0
    %146 = vmatprep.mubr.f32.mxu0 0.0
    %147 = vmatmul.mubr.f32.gmra.mrb[0].mxu0 %v58
    %v148 = vpop.f32.mrb[0].mxu0
    %v149 = vadd.f32 %v80, %v148
    %v150 = vpop.f32.mrb[0].mxu0
    %151 = vdwg.mxu0
    %v152 = vpack.c.bf16 %v149, %v149
    %v153 = vld [vmem:[#allocation5] sm:$0xf]
    %v154 = vld [vmem:[#allocation5 + $0x4] sm:$0xf]
    %v155 = vld [vmem:[#allocation5 + $0x8] sm:$0xf]
    %v156 = vld [vmem:[#allocation5 + $0xc] sm:$0xf]
    %v157 = vld [vmem:[#allocation5 + $0x10] sm:$0xf]
    %v158 = vld [vmem:[#allocation5 + $0x14] sm:$0xf]
    %v159 = vld [vmem:[#allocation5 + $0x18] sm:$0xf]
    %v160 = vld [vmem:[#allocation5 + $0x1c] sm:$0xf]
    %v161 = vld [vmem:[#allocation5 + $0x20] sm:$0xf]
    %v162 = vld [vmem:[#allocation5 + $0x24] sm:$0xf]
    %v163 = vld [vmem:[#allocation5 + $0x28] sm:$0xf]
    %v164 = vld [vmem:[#allocation5 + $0x2c] sm:$0xf]
    %v165 = vld [vmem:[#allocation5 + $0x30] sm:$0xf]
    %v166 = vld [vmem:[#allocation5 + $0x34] sm:$0xf]
    %v167 = vld [vmem:[#allocation5 + $0x38] sm:$0xf]
    %v168 = vld [vmem:[#allocation5 + $0x3c] sm:$0xf]
    %v185 = vunpack.c.l.b16 %v153
    %v186 = vunpack.c.l.b16 %v154
    %v187 = vunpack.c.l.b16 %v155
    %v188 = vunpack.c.l.b16 %v156
    %v189 = vunpack.c.l.b16 %v157
    %v190 = vunpack.c.l.b16 %v158
    %v191 = vunpack.c.l.b16 %v159
    %v192 = vunpack.c.l.b16 %v160
    %v193 = vunpack.c.l.b16 %v161
    %v194 = vunpack.c.l.b16 %v162
    %v195 = vunpack.c.l.b16 %v163
    %v196 = vunpack.c.l.b16 %v164
    %v197 = vunpack.c.l.b16 %v165
    %v198 = vunpack.c.l.b16 %v166
    %v199 = vunpack.c.l.b16 %v167
    %v200 = vunpack.c.l.b16 %v168
    %v201 = vpack.c.b16 %v186, %v185
    %v202 = vpack.c.b16 %v188, %v187
    %v203 = vpack.c.b16 %v190, %v189
    %v204 = vpack.c.b16 %v192, %v191
    %v205 = vpack.c.b16 %v194, %v193
    %v206 = vpack.c.b16 %v196, %v195
    %v207 = vpack.c.b16 %v198, %v197
    %v208 = vpack.c.b16 %v200, %v199
    %217 = vmatprep.subr.bf16.mxu0 0
    %218 = vmatpush1.bf16.msra.mxu0 %v201
    %219 = vmatprep.subr.bf16.mxu0 0
    %220 = vmatpush1.bf16.msra.mxu0 %v202
    %221 = vmatprep.subr.bf16.mxu0 0
    %222 = vmatpush1.bf16.msra.mxu0 %v203
    %223 = vmatprep.subr.bf16.mxu0 0
    %224 = vmatpush1.bf16.msra.mxu0 %v204
    %225 = vmatprep.subr.bf16.mxu0 0
    %226 = vmatpush1.bf16.msra.mxu0 %v205
    %227 = vmatprep.subr.bf16.mxu0 0
    %228 = vmatpush1.bf16.msra.mxu0 %v206
    %229 = vmatprep.subr.bf16.mxu0 0
    %230 = vmatpush1.bf16.msra.mxu0 %v207
    %231 = vmatprep.subr.bf16.mxu0 0
    %232 = vmatpush1.bf16.msra.mxu0 %v208
    %233 = vmatprep.subr.bf16.mxu0 0
    %234 = vmatpush1.bf16.msra.mxu0 0
    %235 = vmatprep.subr.bf16.mxu0 0
    %236 = vmatpush1.bf16.msra.mxu0 0
    %237 = vmatprep.subr.bf16.mxu0 0
    %238 = vmatpush1.bf16.msra.mxu0 0
    %239 = vmatprep.subr.bf16.mxu0 0
    %240 = vmatpush1.bf16.msra.mxu0 0
    %241 = vmatprep.subr.bf16.mxu0 0
    %242 = vmatpush1.bf16.msra.mxu0 0
    %243 = vmatprep.subr.bf16.mxu0 0
    %244 = vmatpush1.bf16.msra.mxu0 0
    %245 = vmatprep.subr.bf16.mxu0 0
    %246 = vmatpush1.bf16.msra.mxu0 0
    %247 = vmatprep.subr.bf16.mxu0 0
    %248 = vmatpush1.bf16.msra.mxu0 0
    %249 = vmatprep.mubr.bf16.mxu0 0
    %250 = vmatmul.mubr.bf16.gmra.mrb[0].mxu0 %v152
    %v251 = vpop.f32.mrb[0].mxu0
    %v252 = vadd.f32 0.0, %v251
    %v253 = vpop.f32.mrb[0].mxu0
    %v254 = vpop.f32.mrb[0].mxu0
    %v255 = vpop.f32.mrb[0].mxu0
    %256 = vdwg.mxu0
    %258 = vset.pattern.permute.xlu0 0
    %259 = vperm.xlu0 %258, %v56
    %v260 = vpop.permute.xlu0 %259
    %v262 = vmul.f32 %v252, %v260
    %v263 = vpack.c.bf16 %v262, %v262
    %vm264 = vcmask 64512
    %v266 = vsel %vm264, %v57, 0
    %vm268 = vcmask 1043456
    %v270 = vsel %vm268, %v263, 0
    %272 = vmatprep.subr.bf16.mxu0 0
    %273 = vmatpush1.bf16.msra.mxu0 %v270
    %274 = vmatprep.subr.bf16.mxu0 0
    %275 = vmatpush1.bf16.msra.mxu0 0
    %276 = vmatprep.subr.bf16.mxu0 0
    %277 = vmatpush1.bf16.msra.mxu0 0
    %278 = vmatprep.subr.bf16.mxu0 0
    %279 = vmatpush1.bf16.msra.mxu0 0
    %280 = vmatprep.subr.bf16.mxu0 0
    %281 = vmatpush1.bf16.msra.mxu0 0
    %282 = vmatprep.subr.bf16.mxu0 0
    %283 = vmatpush1.bf16.msra.mxu0 0
    %284 = vmatprep.subr.bf16.mxu0 0
    %285 = vmatpush1.bf16.msra.mxu0 0
    %286 = vmatprep.subr.bf16.mxu0 0
    %287 = vmatpush1.bf16.msra.mxu0 0
    %288 = vmatprep.subr.bf16.mxu0 0
    %289 = vmatpush1.bf16.msra.mxu0 0
    %290 = vmatprep.subr.bf16.mxu0 0
    %291 = vmatpush1.bf16.msra.mxu0 0
    %292 = vmatprep.subr.bf16.mxu0 0
    %293 = vmatpush1.bf16.msra.mxu0 0
    %294 = vmatprep.subr.bf16.mxu0 0
    %295 = vmatpush1.bf16.msra.mxu0 0
    %296 = vmatprep.subr.bf16.mxu0 0
    %297 = vmatpush1.bf16.msra.mxu0 0
    %298 = vmatprep.subr.bf16.mxu0 0
    %299 = vmatpush1.bf16.msra.mxu0 0
    %300 = vmatprep.subr.bf16.mxu0 0
    %301 = vmatpush1.bf16.msra.mxu0 0
    %302 = vmatprep.subr.bf16.mxu0 0
    %303 = vmatpush1.bf16.msra.mxu0 0
    %304 = vmatprep.mubr.bf16.mxu0 0
    %305 = vmatmul.mubr.bf16.gmra.mrb[0].mxu0 %v266
    %v306 = vpop.f32.mrb[0].mxu0
    %v307 = vadd.f32 0.0, %v306
    %v308 = vpop.f32.mrb[0].mxu0
    %v309 = vpop.f32.mrb[0].mxu0
    %v310 = vpop.f32.mrb[0].mxu0
    %311 = vdwg.mxu0
    %v312 = vmul.f32 %v260, %v307
    %v313 = vld [vmem:[%s6] sm:$0x1]
    %v315 = vlaneseq
    %v316 = vshrl.u32 %v315, 7
    %v317 = vsub.s32 0, %v316
    %v318 = vrot.slane %v313, %v317
    %v320 = vadd.f32 %v312, %v318
    %v321 = vmax.f32 %v320, 0.0
    %v322 = vpack.c.bf16 %v321, %v321
    %s323 = scalar_lea.vmem [#allocation5], 64
    %v324 = vld [vmem:[%s323] sm:$0xf]
    %v325 = vld [vmem:[%s323 + $0x4] sm:$0xf]
    %v326 = vld [vmem:[%s323 + $0x8] sm:$0xf]
    %v327 = vld [vmem:[%s323 + $0xc] sm:$0xf]
    %v328 = vld [vmem:[%s323 + $0x10] sm:$0xf]
    %v329 = vld [vmem:[%s323 + $0x14] sm:$0xf]
    %v330 = vld [vmem:[%s323 + $0x18] sm:$0xf]
    %v331 = vld [vmem:[%s323 + $0x1c] sm:$0xf]
    %v332 = vld [vmem:[%s323 + $0x20] sm:$0xf]
    %v333 = vld [vmem:[%s323 + $0x24] sm:$0xf]
    %v334 = vld [vmem:[%s323 + $0x28] sm:$0xf]
    %v335 = vld [vmem:[%s323 + $0x2c] sm:$0xf]
    %v336 = vld [vmem:[%s323 + $0x30] sm:$0xf]
    %v337 = vld [vmem:[%s323 + $0x34] sm:$0xf]
    %v338 = vld [vmem:[%s323 + $0x38] sm:$0xf]
    %v339 = vld [vmem:[%s323 + $0x3c] sm:$0xf]
    %v356 = vunpack.c.l.b16 %v324
    %v357 = vunpack.c.l.b16 %v325
    %v358 = vunpack.c.l.b16 %v326
    %v359 = vunpack.c.l.b16 %v327
    %v360 = vunpack.c.l.b16 %v328
    %v361 = vunpack.c.l.b16 %v329
    %v362 = vunpack.c.l.b16 %v330
    %v363 = vunpack.c.l.b16 %v331
    %v364 = vunpack.c.l.b16 %v332
    %v365 = vunpack.c.l.b16 %v333
    %v366 = vunpack.c.l.b16 %v334
    %v367 = vunpack.c.l.b16 %v335
    %v368 = vunpack.c.l.b16 %v336
    %v369 = vunpack.c.l.b16 %v337
    %v370 = vunpack.c.l.b16 %v338
    %v371 = vunpack.c.l.b16 %v339
    %v372 = vpack.c.b16 %v357, %v356
    %v373 = vpack.c.b16 %v359, %v358
    %v374 = vpack.c.b16 %v361, %v360
    %v375 = vpack.c.b16 %v363, %v362
    %v376 = vpack.c.b16 %v365, %v364
    %v377 = vpack.c.b16 %v367, %v366
    %v378 = vpack.c.b16 %v369, %v368
    %v379 = vpack.c.b16 %v371, %v370
    %388 = vmatprep.subr.bf16.mxu0 0
    %389 = vmatpush1.bf16.msra.mxu0 %v372
    %390 = vmatprep.subr.bf16.mxu0 0
    %391 = vmatpush1.bf16.msra.mxu0 %v373
    %392 = vmatprep.subr.bf16.mxu0 0
    %393 = vmatpush1.bf16.msra.mxu0 %v374
    %394 = vmatprep.subr.bf16.mxu0 0
    %395 = vmatpush1.bf16.msra.mxu0 %v375
    %396 = vmatprep.subr.bf16.mxu0 0
    %397 = vmatpush1.bf16.msra.mxu0 %v376
    %398 = vmatprep.subr.bf16.mxu0 0
    %399 = vmatpush1.bf16.msra.mxu0 %v377
    %400 = vmatprep.subr.bf16.mxu0 0
    %401 = vmatpush1.bf16.msra.mxu0 %v378
    %402 = vmatprep.subr.bf16.mxu0 0
    %403 = vmatpush1.bf16.msra.mxu0 %v379
    %404 = vmatprep.subr.bf16.mxu0 0
    %405 = vmatpush1.bf16.msra.mxu0 0
    %406 = vmatprep.subr.bf16.mxu0 0
    %407 = vmatpush1.bf16.msra.mxu0 0
    %408 = vmatprep.subr.bf16.mxu0 0
    %409 = vmatpush1.bf16.msra.mxu0 0
    %410 = vmatprep.subr.bf16.mxu0 0
    %411 = vmatpush1.bf16.msra.mxu0 0
    %412 = vmatprep.subr.bf16.mxu0 0
    %413 = vmatpush1.bf16.msra.mxu0 0
    %414 = vmatprep.subr.bf16.mxu0 0
    %415 = vmatpush1.bf16.msra.mxu0 0
    %416 = vmatprep.subr.bf16.mxu0 0
    %417 = vmatpush1.bf16.msra.mxu0 0
    %418 = vmatprep.subr.bf16.mxu0 0
    %419 = vmatpush1.bf16.msra.mxu0 0
    %420 = vmatprep.mubr.bf16.mxu0 0
    %421 = vmatmul.mubr.bf16.gmra.mrb[0].mxu0 %v322
    %v422 = vpop.f32.mrb[0].mxu0
    %v423 = vadd.f32 0.0, %v422
    %v424 = vpop.f32.mrb[0].mxu0
    %v425 = vpop.f32.mrb[0].mxu0
    %v426 = vpop.f32.mrb[0].mxu0
    %427 = vdwg.mxu0
    %v428 = vmul.f32 %v423, %v260
    %v429 = vpack.c.bf16 %v428, %v428
    %v431 = vsel %vm268, %v429, 0
    %433 = vmatprep.subr.bf16.mxu0 0
    %434 = vmatpush1.bf16.msra.mxu0 %v431
    %435 = vmatprep.subr.bf16.mxu0 0
    %436 = vmatpush1.bf16.msra.mxu0 0
    %437 = vmatprep.subr.bf16.mxu0 0
    %438 = vmatpush1.bf16.msra.mxu0 0
    %439 = vmatprep.subr.bf16.mxu0 0
    %440 = vmatpush1.bf16.msra.mxu0 0
    %441 = vmatprep.subr.bf16.mxu0 0
    %442 = vmatpush1.bf16.msra.mxu0 0
    %443 = vmatprep.subr.bf16.mxu0 0
    %444 = vmatpush1.bf16.msra.mxu0 0
    %445 = vmatprep.subr.bf16.mxu0 0
    %446 = vmatpush1.bf16.msra.mxu0 0
    %447 = vmatprep.subr.bf16.mxu0 0
    %448 = vmatpush1.bf16.msra.mxu0 0
    %449 = vmatprep.subr.bf16.mxu0 0
    %450 = vmatpush1.bf16.msra.mxu0 0
    %451 = vmatprep.subr.bf16.mxu0 0
    %452 = vmatpush1.bf16.msra.mxu0 0
    %453 = vmatprep.subr.bf16.mxu0 0
    %454 = vmatpush1.bf16.msra.mxu0 0
    %455 = vmatprep.subr.bf16.mxu0 0
    %456 = vmatpush1.bf16.msra.mxu0 0
    %457 = vmatprep.subr.bf16.mxu0 0
    %458 = vmatpush1.bf16.msra.mxu0 0
    %459 = vmatprep.subr.bf16.mxu0 0
    %460 = vmatpush1.bf16.msra.mxu0 0
    %461 = vmatprep.subr.bf16.mxu0 0
    %462 = vmatpush1.bf16.msra.mxu0 0
    %463 = vmatprep.subr.bf16.mxu0 0
    %464 = vmatpush1.bf16.msra.mxu0 0
    %465 = vmatprep.mubr.bf16.mxu0 0
    %466 = vmatmul.mubr.bf16.gmra.mrb[0].mxu0 %v266
    %v467 = vpop.f32.mrb[0].mxu0
    %v468 = vadd.f32 0.0, %v467
    %v469 = vpop.f32.mrb[0].mxu0
    %v470 = vpop.f32.mrb[0].mxu0
    %v471 = vpop.f32.mrb[0].mxu0
    %472 = vdwg.mxu0
    %v473 = vmul.f32 %v260, %v468
    %s474 = scalar_lea.vmem %s6, 1
    %v475 = vld [vmem:[%s474] sm:$0x1]
    %v477 = vlaneseq
    %v478 = vshrl.u32 %v477, 7
    %v479 = vsub.s32 0, %v478
    %v480 = vrot.slane %v475, %v479
    %v482 = vadd.f32 %v473, %v480
    %v483 = vmax.f32 %v482, 0.0
    %v484 = vpack.c.bf16 %v483, %v483
    %s485 = scalar_lea.vmem [#allocation5], 128
    %v486 = vld [vmem:[%s485] sm:$0xf]
    %v487 = vld [vmem:[%s485 + $0x4] sm:$0xf]
    %v488 = vld [vmem:[%s485 + $0x8] sm:$0xf]
    %v489 = vld [vmem:[%s485 + $0xc] sm:$0xf]
    %v490 = vld [vmem:[%s485 + $0x10] sm:$0xf]
    %v491 = vld [vmem:[%s485 + $0x14] sm:$0xf]
    %v492 = vld [vmem:[%s485 + $0x18] sm:$0xf]
    %v493 = vld [vmem:[%s485 + $0x1c] sm:$0xf]
    %v494 = vld [vmem:[%s485 + $0x20] sm:$0xf]
    %v495 = vld [vmem:[%s485 + $0x24] sm:$0xf]
    %v496 = vld [vmem:[%s485 + $0x28] sm:$0xf]
    %v497 = vld [vmem:[%s485 + $0x2c] sm:$0xf]
    %v498 = vld [vmem:[%s485 + $0x30] sm:$0xf]
    %v499 = vld [vmem:[%s485 + $0x34] sm:$0xf]
    %v500 = vld [vmem:[%s485 + $0x38] sm:$0xf]
    %v501 = vld [vmem:[%s485 + $0x3c] sm:$0xf]
    %v518 = vunpack.c.l.b16 %v486
    %v519 = vunpack.c.l.b16 %v487
    %v520 = vunpack.c.l.b16 %v488
    %v521 = vunpack.c.l.b16 %v489
    %v522 = vunpack.c.l.b16 %v490
    %v523 = vunpack.c.l.b16 %v491
    %v524 = vunpack.c.l.b16 %v492
    %v525 = vunpack.c.l.b16 %v493
    %v526 = vunpack.c.l.b16 %v494
    %v527 = vunpack.c.l.b16 %v495
    %v528 = vunpack.c.l.b16 %v496
    %v529 = vunpack.c.l.b16 %v497
    %v530 = vunpack.c.l.b16 %v498
    %v531 = vunpack.c.l.b16 %v499
    %v532 = vunpack.c.l.b16 %v500
    %v533 = vunpack.c.l.b16 %v501
    %v534 = vpack.c.b16 %v519, %v518
    %v535 = vpack.c.b16 %v521, %v520
    %v536 = vpack.c.b16 %v523, %v522
    %v537 = vpack.c.b16 %v525, %v524
    %v538 = vpack.c.b16 %v527, %v526
    %v539 = vpack.c.b16 %v529, %v528
    %v540 = vpack.c.b16 %v531, %v530
    %v541 = vpack.c.b16 %v533, %v532
    %550 = vmatprep.subr.bf16.mxu0 0
    %551 = vmatpush1.bf16.msra.mxu0 %v534
    %552 = vmatprep.subr.bf16.mxu0 0
    %553 = vmatpush1.bf16.msra.mxu0 %v535
    %554 = vmatprep.subr.bf16.mxu0 0
    %555 = vmatpush1.bf16.msra.mxu0 %v536
    %556 = vmatprep.subr.bf16.mxu0 0
    %557 = vmatpush1.bf16.msra.mxu0 %v537
    %558 = vmatprep.subr.bf16.mxu0 0
    %559 = vmatpush1.bf16.msra.mxu0 %v538
    %560 = vmatprep.subr.bf16.mxu0 0
    %561 = vmatpush1.bf16.msra.mxu0 %v539
    %562 = vmatprep.subr.bf16.mxu0 0
    %563 = vmatpush1.bf16.msra.mxu0 %v540
    %564 = vmatprep.subr.bf16.mxu0 0
    %565 = vmatpush1.bf16.msra.mxu0 %v541
    %566 = vmatprep.subr.bf16.mxu0 0
    %567 = vmatpush1.bf16.msra.mxu0 0
    %568 = vmatprep.subr.bf16.mxu0 0
    %569 = vmatpush1.bf16.msra.mxu0 0
    %570 = vmatprep.subr.bf16.mxu0 0
    %571 = vmatpush1.bf16.msra.mxu0 0
    %572 = vmatprep.subr.bf16.mxu0 0
    %573 = vmatpush1.bf16.msra.mxu0 0
    %574 = vmatprep.subr.bf16.mxu0 0
    %575 = vmatpush1.bf16.msra.mxu0 0
    %576 = vmatprep.subr.bf16.mxu0 0
    %577 = vmatpush1.bf16.msra.mxu0 0
    %578 = vmatprep.subr.bf16.mxu0 0
    %579 = vmatpush1.bf16.msra.mxu0 0
    %580 = vmatprep.subr.bf16.mxu0 0
    %581 = vmatpush1.bf16.msra.mxu0 0
    %582 = vmatprep.mubr.bf16.mxu0 0
    %583 = vmatmul.mubr.bf16.gmra.mrb[0].mxu0 %v484
    %v584 = vpop.f32.mrb[0].mxu0
    %v585 = vadd.f32 0.0, %v584
    %v586 = vpop.f32.mrb[0].mxu0
    %v587 = vpop.f32.mrb[0].mxu0
    %v588 = vpop.f32.mrb[0].mxu0
    %589 = vdwg.mxu0
    %v590 = vmul.f32 %v585, %v260
    %v591 = vpack.c.bf16 %v590, %v590
    %v593 = vsel %vm268, %v591, 0
    %595 = vmatprep.subr.bf16.mxu0 0
    %596 = vmatpush1.bf16.msra.mxu0 %v593
    %597 = vmatprep.subr.bf16.mxu0 0
    %598 = vmatpush1.bf16.msra.mxu0 0
    %599 = vmatprep.subr.bf16.mxu0 0
    %600 = vmatpush1.bf16.msra.mxu0 0
    %601 = vmatprep.subr.bf16.mxu0 0
    %602 = vmatpush1.bf16.msra.mxu0 0
    %603 = vmatprep.subr.bf16.mxu0 0
    %604 = vmatpush1.bf16.msra.mxu0 0
    %605 = vmatprep.subr.bf16.mxu0 0
    %606 = vmatpush1.bf16.msra.mxu0 0
    %607 = vmatprep.subr.bf16.mxu0 0
    %608 = vmatpush1.bf16.msra.mxu0 0
    %609 = vmatprep.subr.bf16.mxu0 0
    %610 = vmatpush1.bf16.msra.mxu0 0
    %611 = vmatprep.subr.bf16.mxu0 0
    %612 = vmatpush1.bf16.msra.mxu0 0
    %613 = vmatprep.subr.bf16.mxu0 0
    %614 = vmatpush1.bf16.msra.mxu0 0
    %615 = vmatprep.subr.bf16.mxu0 0
    %616 = vmatpush1.bf16.msra.mxu0 0
    %617 = vmatprep.subr.bf16.mxu0 0
    %618 = vmatpush1.bf16.msra.mxu0 0
    %619 = vmatprep.subr.bf16.mxu0 0
    %620 = vmatpush1.bf16.msra.mxu0 0
    %621 = vmatprep.subr.bf16.mxu0 0
    %622 = vmatpush1.bf16.msra.mxu0 0
    %623 = vmatprep.subr.bf16.mxu0 0
    %624 = vmatpush1.bf16.msra.mxu0 0
    %625 = vmatprep.subr.bf16.mxu0 0
    %626 = vmatpush1.bf16.msra.mxu0 0
    %627 = vmatprep.mubr.bf16.mxu0 0
    %628 = vmatmul.mubr.bf16.gmra.mrb[0].mxu0 %v266
    %v629 = vpop.f32.mrb[0].mxu0
    %v630 = vadd.f32 0.0, %v629
    %v631 = vpop.f32.mrb[0].mxu0
    %v632 = vpop.f32.mrb[0].mxu0
    %v633 = vpop.f32.mrb[0].mxu0
    %634 = vdwg.mxu0
    %v635 = vmul.f32 %v260, %v630
    %s636 = scalar_lea.vmem %s6, 2
    %v637 = vld [vmem:[%s636] sm:$0x1]
    %v639 = vlaneseq
    %v640 = vshrl.u32 %v639, 7
    %v641 = vsub.s32 0, %v640
    %v642 = vrot.slane %v637, %v641
    %v644 = vadd.f32 %v635, %v642
    %v645 = vmax.f32 %v644, 0.0
    %v646 = vpack.c.bf16 %v645, %v645
    %s647 = scalar_lea.vmem [#allocation5], 192
    %v648 = vld [vmem:[%s647] sm:$0xf]
    %v649 = vld [vmem:[%s647 + $0x4] sm:$0xf]
    %v650 = vld [vmem:[%s647 + $0x8] sm:$0xf]
    %v651 = vld [vmem:[%s647 + $0xc] sm:$0xf]
    %v652 = vld [vmem:[%s647 + $0x10] sm:$0xf]
    %v653 = vld [vmem:[%s647 + $0x14] sm:$0xf]
    %v654 = vld [vmem:[%s647 + $0x18] sm:$0xf]
    %v655 = vld [vmem:[%s647 + $0x1c] sm:$0xf]
    %v656 = vld [vmem:[%s647 + $0x20] sm:$0xf]
    %v657 = vld [vmem:[%s647 + $0x24] sm:$0xf]
    %v658 = vld [vmem:[%s647 + $0x28] sm:$0xf]
    %v659 = vld [vmem:[%s647 + $0x2c] sm:$0xf]
    %v660 = vld [vmem:[%s647 + $0x30] sm:$0xf]
    %v661 = vld [vmem:[%s647 + $0x34] sm:$0xf]
    %v662 = vld [vmem:[%s647 + $0x38] sm:$0xf]
    %v663 = vld [vmem:[%s647 + $0x3c] sm:$0xf]
    %v680 = vunpack.c.l.b16 %v648
    %v681 = vunpack.c.l.b16 %v649
    %v682 = vunpack.c.l.b16 %v650
    %v683 = vunpack.c.l.b16 %v651
    %v684 = vunpack.c.l.b16 %v652
    %v685 = vunpack.c.l.b16 %v653
    %v686 = vunpack.c.l.b16 %v654
    %v687 = vunpack.c.l.b16 %v655
    %v688 = vunpack.c.l.b16 %v656
    %v689 = vunpack.c.l.b16 %v657
    %v690 = vunpack.c.l.b16 %v658
    %v691 = vunpack.c.l.b16 %v659
    %v692 = vunpack.c.l.b16 %v660
    %v693 = vunpack.c.l.b16 %v661
    %v694 = vunpack.c.l.b16 %v662
    %v695 = vunpack.c.l.b16 %v663
    %v696 = vpack.c.b16 %v681, %v680
    %v697 = vpack.c.b16 %v683, %v682
    %v698 = vpack.c.b16 %v685, %v684
    %v699 = vpack.c.b16 %v687, %v686
    %v700 = vpack.c.b16 %v689, %v688
    %v701 = vpack.c.b16 %v691, %v690
    %v702 = vpack.c.b16 %v693, %v692
    %v703 = vpack.c.b16 %v695, %v694
    %712 = vmatprep.subr.bf16.mxu0 0
    %713 = vmatpush1.bf16.msra.mxu0 %v696
    %714 = vmatprep.subr.bf16.mxu0 0
    %715 = vmatpush1.bf16.msra.mxu0 %v697
    %716 = vmatprep.subr.bf16.mxu0 0
    %717 = vmatpush1.bf16.msra.mxu0 %v698
    %718 = vmatprep.subr.bf16.mxu0 0
    %719 = vmatpush1.bf16.msra.mxu0 %v699
    %720 = vmatprep.subr.bf16.mxu0 0
    %721 = vmatpush1.bf16.msra.mxu0 %v700
    %722 = vmatprep.subr.bf16.mxu0 0
    %723 = vmatpush1.bf16.msra.mxu0 %v701
    %724 = vmatprep.subr.bf16.mxu0 0
    %725 = vmatpush1.bf16.msra.mxu0 %v702
    %726 = vmatprep.subr.bf16.mxu0 0
    %727 = vmatpush1.bf16.msra.mxu0 %v703
    %728 = vmatprep.subr.bf16.mxu0 0
    %729 = vmatpush1.bf16.msra.mxu0 0
    %730 = vmatprep.subr.bf16.mxu0 0
    %731 = vmatpush1.bf16.msra.mxu0 0
    %732 = vmatprep.subr.bf16.mxu0 0
    %733 = vmatpush1.bf16.msra.mxu0 0
    %734 = vmatprep.subr.bf16.mxu0 0
    %735 = vmatpush1.bf16.msra.mxu0 0
    %736 = vmatprep.subr.bf16.mxu0 0
    %737 = vmatpush1.bf16.msra.mxu0 0
    %738 = vmatprep.subr.bf16.mxu0 0
    %739 = vmatpush1.bf16.msra.mxu0 0
    %740 = vmatprep.subr.bf16.mxu0 0
    %741 = vmatpush1.bf16.msra.mxu0 0
    %742 = vmatprep.subr.bf16.mxu0 0
    %743 = vmatpush1.bf16.msra.mxu0 0
    %744 = vmatprep.mubr.bf16.mxu0 0
    %745 = vmatmul.mubr.bf16.gmra.mrb[0].mxu0 %v646
    %v746 = vpop.f32.mrb[0].mxu0
    %v747 = vadd.f32 0.0, %v746
    %v748 = vpop.f32.mrb[0].mxu0
    %v749 = vpop.f32.mrb[0].mxu0
    %v750 = vpop.f32.mrb[0].mxu0
    %751 = vdwg.mxu0
    %v752 = vmul.f32 %v747, %v260
    %v753 = vpack.c.bf16 %v752, %v752
    %v755 = vsel %vm268, %v753, 0
    %757 = vmatprep.subr.bf16.mxu0 0
    %758 = vmatpush1.bf16.msra.mxu0 %v755
    %759 = vmatprep.subr.bf16.mxu0 0
    %760 = vmatpush1.bf16.msra.mxu0 0
    %761 = vmatprep.subr.bf16.mxu0 0
    %762 = vmatpush1.bf16.msra.mxu0 0
    %763 = vmatprep.subr.bf16.mxu0 0
    %764 = vmatpush1.bf16.msra.mxu0 0
    %765 = vmatprep.subr.bf16.mxu0 0
    %766 = vmatpush1.bf16.msra.mxu0 0
    %767 = vmatprep.subr.bf16.mxu0 0
    %768 = vmatpush1.bf16.msra.mxu0 0
    %769 = vmatprep.subr.bf16.mxu0 0
    %770 = vmatpush1.bf16.msra.mxu0 0
    %771 = vmatprep.subr.bf16.mxu0 0
    %772 = vmatpush1.bf16.msra.mxu0 0
    %773 = vmatprep.subr.bf16.mxu0 0
    %774 = vmatpush1.bf16.msra.mxu0 0
    %775 = vmatprep.subr.bf16.mxu0 0
    %776 = vmatpush1.bf16.msra.mxu0 0
    %777 = vmatprep.subr.bf16.mxu0 0
    %778 = vmatpush1.bf16.msra.mxu0 0
    %779 = vmatprep.subr.bf16.mxu0 0
    %780 = vmatpush1.bf16.msra.mxu0 0
    %781 = vmatprep.subr.bf16.mxu0 0
    %782 = vmatpush1.bf16.msra.mxu0 0
    %783 = vmatprep.subr.bf16.mxu0 0
    %784 = vmatpush1.bf16.msra.mxu0 0
    %785 = vmatprep.subr.bf16.mxu0 0
    %786 = vmatpush1.bf16.msra.mxu0 0
    %787 = vmatprep.subr.bf16.mxu0 0
    %788 = vmatpush1.bf16.msra.mxu0 0
    %789 = vmatprep.mubr.bf16.mxu0 0
    %790 = vmatmul.mubr.bf16.gmra.mrb[0].mxu0 %v266
    %v791 = vpop.f32.mrb[0].mxu0
    %v792 = vadd.f32 0.0, %v791
    %v793 = vpop.f32.mrb[0].mxu0
    %v794 = vpop.f32.mrb[0].mxu0
    %v795 = vpop.f32.mrb[0].mxu0
    %796 = vdwg.mxu0
    %v797 = vmul.f32 %v260, %v792
    %s798 = scalar_lea.vmem %s6, 3
    %v799 = vld [vmem:[%s798] sm:$0x1]
    %v801 = vlaneseq
    %v802 = vshrl.u32 %v801, 7
    %v803 = vsub.s32 0, %v802
    %v804 = vrot.slane %v799, %v803
    %v806 = vadd.f32 %v797, %v804
    %v807 = vmax.f32 %v806, 0.0
    %808 = vst [vmem:[#allocation7] sm:$0xff] %v807
    // Predicated region
    $region38: #{tpu_custom_call.1} parent=1 // pred_check
      _
    $region39: #{tpu_custom_call.1} parent=1 // pred_check_branch
      %810 = sbr.rel (0) target = $region41
    $region40: #{tpu_custom_call.1} parent=1 // pred_region
      %s812 = ssub.s32 128, 128
      %813 = vsyncadd [#allocation4], %s812
      %s815 = sshll.u32 [#allocation7], 4
      %s816 = int_to_ptr.vmem [resolvable:$true] %s815
      %818 = dma.vmem_to_hbm [thread:$0]  %s816, 128, %s7, [#allocation4]
    $region41: #{tpu_custom_call.1} parent=1 // pred_fallthru
      _
    // Predicated region
    $region42: #{tpu_custom_call.1} parent=1 // pred_check
      _
    $region43: #{tpu_custom_call.1} parent=1 // pred_check_branch
      %820 = sbr.rel (0) target = $region45
    $region44: #{tpu_custom_call.1} parent=1 // pred_region
      %821 = dma.done [#allocation4], 128
    $region45: #{tpu_custom_call.1} parent=1 // pred_fallthru
      _
    %822 = vsyncpa [#allocation3], 1
    %823 = vsyncpa [#allocation6], 1
    %824 = vsyncpa [#allocation4], 1

</llo_original>
